<compile_context>
chip_gen: v6e
topology: v6e:2x2x1
jax: 0.10.0
libtpu: 0.0.40
codegen_flags: <defaults>
</compile_context>

<pallas_src>
import jax
import jax.numpy as jnp
from jax import lax
from jax.experimental import pallas as pl
from jax.experimental.pallas import tpu as pltpu


_MAX_BLOCK_ELEMS = 512 * 1024      # ~2 MiB of f32 per block buffer
_MAX_LANES = 32 * 128              # cap on lane (last-dim) width of the 2-D layout


def _diff1_tiled_kernel(scale_ref, u_ref, nxt_ref, prv_ref, o_ref):
    """Circular central difference over the row-major flattening of (R, C).

    u_ref:   (TR, C) tile of the field, C a multiple of 128.
    nxt_ref: (TR, 1) with nxt[r] = u2d[(r+1) % R, 0]     (wrap for lane C-1)
    prv_ref: (TR, 1) with prv[r] = u2d[(r-1) % R, C-1]   (wrap for lane 0)
    """
    inv_two_dx = scale_ref[0, 0]
    u = u_ref[...]
    c = u.shape[-1]

    # XLU lane rotations; shifts follow the jnp.roll convention.
    u_plus = pltpu.roll(u, c - 1, axis=1)     # u[r, (j+1) % C]
    u_minus = pltpu.roll(u, 1, axis=1)        # u[r, (j-1) % C]

    lane = lax.broadcasted_iota(jnp.int32, u.shape, 1)
    u_plus = jnp.where(lane == c - 1, nxt_ref[...], u_plus)
    u_minus = jnp.where(lane == 0, prv_ref[...], u_minus)

    o_ref[...] = ((u_plus - u_minus) * inv_two_dx).astype(o_ref.dtype)


def _diff1_flat_kernel(scale_ref, u_ref, o_ref):
    """Fallback: whole field as a single (1, N) block (N not a multiple of 128)."""
    inv_two_dx = scale_ref[0, 0]
    u = u_ref[...]
    u_plus = jnp.concatenate([u[:, 1:], u[:, :1]], axis=1)
    u_minus = jnp.concatenate([u[:, -1:], u[:, :-1]], axis=1)
    o_ref[...] = ((u_plus - u_minus) * inv_two_dx).astype(o_ref.dtype)


def _choose_lanes(n):
    """Largest multiple of 128 that divides n (capped at _MAX_LANES); 0 if none."""
    for k in range(min(n // 128, _MAX_LANES // 128), 0, -1):
        if n % (128 * k) == 0:
            return 128 * k
    return 0


def _choose_rows(r, c, max_rows_per_block):
    budget = max(1, _MAX_BLOCK_ELEMS // c)
    tr = min(r, budget)
    if max_rows_per_block is not None:
        tr = min(tr, max_rows_per_block)
    if tr >= r:
        return r
    return max(8, (tr // 8) * 8)   # block's second-to-last dim must be /8 (or == r)


def order2_diff1(u, dx, *, max_rows_per_block=None):
    """JAX/Pallas equivalent of Order2_Diff1_Old(dx).forward(u).

    Matches the PyTorch module: `u` is an effectively 1-D field (shape (1, N)
    or (N,) — the torch module only admits such inputs), differenced
    circularly with 2nd-order accuracy, divided by 2*dx, and reshaped back to
    the original shape.
    """
    original_shape = u.shape
    u1d = u.reshape(-1)
    n = u1d.shape[0]

    scale = jnp.full((1, 1), 1.0 / (2.0 * dx), dtype=jnp.float32)
    smem_spec = pl.BlockSpec(memory_space=pltpu.MemorySpace.SMEM)

    c = _choose_lanes(n)
    if c == 0 or n < 128:
        # Tiny / oddly sized field: single-block kernel (launch-overhead bound;
        # lane padding not worth it here).
        out = pl.pallas_call(
            _diff1_flat_kernel,
            out_shape=jax.ShapeDtypeStruct((1, n), u1d.dtype),
            grid=(1,),
            in_specs=[smem_spec, pl.BlockSpec((1, n), lambda i: (0, 0))],
            out_specs=pl.BlockSpec((1, n), lambda i: (0, 0)),
        )(scale, u1d.reshape(1, n))
        return out.reshape(original_shape)

    r = n // c
    u2d = u1d.reshape(r, c)

    # Cross-row wrap neighbours (tiny (R,1) side inputs; ~2/C extra bytes read).
    nxt = jnp.roll(u2d[:, 0], -1).reshape(r, 1)    # u2d[(row+1) % r, 0]
    prv = jnp.roll(u2d[:, -1], 1).reshape(r, 1)    # u2d[(row-1) % r, -1]

    tr = _choose_rows(r, c, max_rows_per_block)
    grid = (pl.cdiv(r, tr),)

    out2d = pl.pallas_call(
        _diff1_tiled_kernel,
        out_shape=jax.ShapeDtypeStruct((r, c), u2d.dtype),
        grid=grid,
        in_specs=[
            smem_spec,
            pl.BlockSpec((tr, c), lambda i: (i, 0)),
            pl.BlockSpec((tr, 1), lambda i: (i, 0)),
            pl.BlockSpec((tr, 1), lambda i: (i, 0)),
        ],
        out_specs=pl.BlockSpec((tr, c), lambda i: (i, 0)),
        compiler_params=pltpu.CompilerParams(
            dimension_semantics=("parallel",)),
    )(scale, u2d, nxt, prv)

    return out2d.reshape(original_shape)


if __name__ == "__main__":
    key = jax.random.PRNGKey(0)
    dx = 0.1
    inv = 1.0 / (2.0 * dx)

    def reference(u):
        # Circular central difference along the last (only nontrivial) axis.
        return (jnp.roll(u, -1, axis=-1) - jnp.roll(u, 1, axis=-1)) * inv

    k1, k2, k3 = jax.random.split(key, 3)

    # Case 1: lane-dense tiled path, single block (N multiple of 128).
    u1 = jax.random.normal(k1, (1, 2048), dtype=jnp.float32)
    out1 = jax.block_until_ready(order2_diff1(u1, dx))
    assert out1.shape == u1.shape and out1.dtype == u1.dtype
    assert jnp.allclose(out1, reference(u1), atol=1e-5, rtol=1e-5)

    # Case 2: multi-block "parallel" grid with a remainder block, exercising the
    #         pipelined row tiling and cross-block wrap columns.
    u2 = jax.random.normal(k2, (1, 128 * 37), dtype=jnp.float32)
    out2 = jax.block_until_ready(order2_diff1(u2, dx, max_rows_per_block=8))
    assert jnp.allclose(out2, reference(u2), atol=1e-5, rtol=1e-5)

    # Case 3: fallback single-block path (length not a multiple of 128).
    u3 = jax.random.normal(k3, (1, 200), dtype=jnp.float32)
    out3 = jax.block_until_ready(order2_diff1(u3, dx))
    assert jnp.allclose(out3, reference(u3), atol=1e-5, rtol=1e-5)

    print("KERNEL_OK")
</pallas_src>

<mosaic_0001>
module attributes {stable_mosaic.version = 11 : i64} {
  func.func @_diff1_tiled_kernel(%arg0: i32, %arg1: memref<1x1xf32, #tpu.memory_space<smem>>, %arg2: memref<1x2048xf32, #tpu.memory_space<vmem>>, %arg3: memref<1x1xf32, #tpu.memory_space<vmem>>, %arg4: memref<1x1xf32, #tpu.memory_space<vmem>>, %arg5: memref<1x2048xf32, #tpu.memory_space<vmem>>) attributes {dimension_semantics = [#tpu.dimension_semantics<parallel>], iteration_bounds = array<i64: 1>, scalar_prefetch = 0 : i64, scratch_operands = 0 : i64, tpu.core_type = #tpu.core_type<tc>, window_params = [{transform_indices = @transform_0, window_bounds = array<i64: 1, 1>}, {transform_indices = @transform_1, window_bounds = array<i64: 1, 2048>}, {transform_indices = @transform_2, window_bounds = array<i64: 1, 1>}, {transform_indices = @transform_3, window_bounds = array<i64: 1, 1>}, {transform_indices = @transform_4, window_bounds = array<i64: 1, 2048>}]} {
    %c0 = arith.constant 0 : index
    %c0_0 = arith.constant 0 : index
    %0 = memref.load %arg1[%c0, %c0_0] : memref<1x1xf32, #tpu.memory_space<smem>>
    %c0_1 = arith.constant 0 : index
    %c0_2 = arith.constant 0 : index
    %1 = vector.load %arg2[%c0_1, %c0_2] : memref<1x2048xf32, #tpu.memory_space<vmem>>, vector<1x2048xf32>
    %c2047_i32 = arith.constant 2047 : i32
    %2 = tpu.dynamic_rotate %1 by %c2047_i32 dim 1 : vector<1x2048xf32>, i32 -> vector<1x2048xf32>
    %c1_i32 = arith.constant 1 : i32
    %3 = tpu.dynamic_rotate %1 by %c1_i32 dim 1 : vector<1x2048xf32>, i32 -> vector<1x2048xf32>
    %4 = tpu.iota {dimensions = array<i32: 1>} : vector<1x2048xi32>
    %c2047_i32_3 = arith.constant 2047 : i32
    %5 = vector.broadcast %c2047_i32_3 : i32 to vector<1x2048xi32>
    %6 = arith.cmpi eq, %4, %5 : vector<1x2048xi32>
    %c0_4 = arith.constant 0 : index
    %c0_5 = arith.constant 0 : index
    %7 = vector.load %arg3[%c0_4, %c0_5] : memref<1x1xf32, #tpu.memory_space<vmem>>, vector<1x1xf32>
    %8 = vector.shape_cast %7 : vector<1x1xf32> to vector<1x1xf32>
    %9 = vector.broadcast %8 : vector<1x1xf32> to vector<1x2048xf32>
    %10 = arith.select %6, %9, %2 : vector<1x2048xi1>, vector<1x2048xf32>
    %c0_i32 = arith.constant 0 : i32
    %11 = vector.broadcast %c0_i32 : i32 to vector<1x2048xi32>
    %12 = arith.cmpi eq, %4, %11 : vector<1x2048xi32>
    %c0_6 = arith.constant 0 : index
    %c0_7 = arith.constant 0 : index
    %13 = vector.load %arg4[%c0_6, %c0_7] : memref<1x1xf32, #tpu.memory_space<vmem>>, vector<1x1xf32>
    %14 = vector.shape_cast %13 : vector<1x1xf32> to vector<1x1xf32>
    %15 = vector.broadcast %14 : vector<1x1xf32> to vector<1x2048xf32>
    %16 = arith.select %12, %15, %3 : vector<1x2048xi1>, vector<1x2048xf32>
    %17 = arith.subf %10, %16 : vector<1x2048xf32>
    %18 = vector.broadcast %0 : f32 to vector<1x2048xf32>
    %19 = arith.mulf %17, %18 : vector<1x2048xf32>
    %c0_8 = arith.constant 0 : index
    %c0_9 = arith.constant 0 : index
    %20 = vector.load %arg5[%c0_8, %c0_9] : memref<1x2048xf32, #tpu.memory_space<vmem>>, vector<1x2048xf32>
    tpu.vector_store %arg5[%c0_8, %c0_9], %19 {strides = array<i32>} : memref<1x2048xf32, #tpu.memory_space<vmem>>, vector<1x2048xf32>,
    return
  }
  func.func @transform_0(%arg0: i32) -> (i32, i32) {
    %c0_i32 = arith.constant 0 : i32
    %c0_i32_0 = arith.constant 0 : i32
    %c0_i32_1 = arith.constant 0 : i32
    return %c0_i32, %c0_i32_0 : i32, i32
  }
  func.func @transform_1(%arg0: i32) -> (i32, i32) {
    %c0_i32 = arith.constant 0 : i32
    %c0_i32_0 = arith.constant 0 : i32
    return %arg0, %c0_i32 : i32, i32
  }
  func.func @transform_2(%arg0: i32) -> (i32, i32) {
    %c0_i32 = arith.constant 0 : i32
    %c0_i32_0 = arith.constant 0 : i32
    return %arg0, %c0_i32 : i32, i32
  }
  func.func @transform_3(%arg0: i32) -> (i32, i32) {
    %c0_i32 = arith.constant 0 : i32
    %c0_i32_0 = arith.constant 0 : i32
    return %arg0, %c0_i32 : i32, i32
  }
  func.func @transform_4(%arg0: i32) -> (i32, i32) {
    %c0_i32 = arith.constant 0 : i32
    %c0_i32_0 = arith.constant 0 : i32
    return %arg0, %c0_i32 : i32, i32
  }
}

</mosaic_0001>

<llo_original>
// kernel: tpu_custom_call.1
$region0: #{tpu_custom_call.1}
  #allocation0 [shape = 'u32[]', space=smem, size = 0x4, offset = 0x4, fixed_abs, tag = 'smem constant byte address 0x4 - core index']
  #allocation1 [shape = 'u32[144,128]{1,0:T(1,128)}', space=vmem, size = 0x12000, scoped, tag = 'internal scratch']
  #allocation2 [shape = 'f32[1,1]{1,0:T(1,128)S(6)}', space=smem, size = 0x200, scoped, tag = 'scoped memory for tpu_custom_call.1']
  #allocation3 [shape = 'f32[1,1]{1,0:T(1,128)S(1)}', space=vmem, size = 0x200, scoped, tag = 'scoped memory for tpu_custom_call.1']
  #allocation4 [shape = 'f32[1,1]{1,0:T(1,128)S(1)}', space=vmem, size = 0x200, scoped, tag = 'scoped memory for tpu_custom_call.1']
  %s0 = inlined_call_operand.<no memory space> [shape: f32[1,1], index: 0, kind: input, shape index: {}]
  %s1 = inlined_call_operand.hbm [shape: f32[1,2048], index: 1, kind: input, shape index: {}]
  %s2 = inlined_call_operand.<no memory space> [shape: f32[1,1], index: 2, kind: input, shape index: {}]
  %s3 = inlined_call_operand.<no memory space> [shape: f32[1,1], index: 3, kind: input, shape index: {}]
  %s4 = inlined_call_operand.hbm [shape: f32[1,2048], index: 4, kind: output, shape index: {}]
  %s5 = sld [smem:[#allocation0]]
  $region30: #{tpu_custom_call.1} parent=0
    _
  %s7 = ssub.s32 1, %s5
  %s8 = scalar_select 0, %s7, %s5
  %9 = sst [smem:[#allocation2]] %s0
  %v10 = vstv %s2
  %11 = vst [vmem:[#allocation3] sm:$0x1] %v10
  %v12 = vstv %s3
  %13 = vst [vmem:[#allocation4] sm:$0x1] %v12
  $region1: #{tpu_custom_call.1} parent=0
    #allocation5 [shape = 'u8[8192]{0}', space=vmem, size = 0x2000, scoped, tag = 'input window, operand 1, single buffered']
    #allocation6 [shape = 's32[1]{0}', space=sflag, size = 0x4, scoped, tag = 'scoped memory for tpu_custom_call.1']
    #allocation7 [shape = 's32[1]{0}', space=sflag, size = 0x4, scoped, tag = 'scoped memory for tpu_custom_call.1']
    #allocation8 [shape = 'u8[8192]{0}', space=vmem, size = 0x2000, scoped, tag = 'output window, operand 0, single buffered']
    %14 = vsyncpa [#allocation6], 0
    %15 = vsyncpa [#allocation7], 0
    // Predicated region
    $region2: #{tpu_custom_call.1} parent=1 // pred_check
      _
    $region3: #{tpu_custom_call.1} parent=1 // pred_check_branch
      %17 = sbr.rel (0) target = $region5
    $region4: #{tpu_custom_call.1} parent=1 // pred_region
      _
    $region5: #{tpu_custom_call.1} parent=1 // pred_fallthru
      _
    // Predicated region
    $region6: #{tpu_custom_call.1} parent=1 // pred_check
      _
    $region7: #{tpu_custom_call.1} parent=1 // pred_check_branch
      %19 = sbr.rel (0) target = $region9
    $region8: #{tpu_custom_call.1} parent=1 // pred_region
      %s21 = ssub.s32 256, 256
      %22 = vsyncadd [#allocation6], %s21
      %s24 = sshll.u32 [#allocation5], 4
      %s25 = int_to_ptr.vmem [resolvable:$true] %s24
      %27 = dma.hbm_to_vmem [thread:$0]  %s1, 256, %s25, [#allocation6]
    $region9: #{tpu_custom_call.1} parent=1 // pred_fallthru
      _
    // Predicated region
    $region10: #{tpu_custom_call.1} parent=1 // pred_check
      _
    $region11: #{tpu_custom_call.1} parent=1 // pred_check_branch
      %29 = sbr.rel (0) target = $region13
    $region12: #{tpu_custom_call.1} parent=1 // pred_region
      _
    $region13: #{tpu_custom_call.1} parent=1 // pred_fallthru
      _
    // Predicated region
    $region14: #{tpu_custom_call.1} parent=1 // pred_check
      _
    $region15: #{tpu_custom_call.1} parent=1 // pred_check_branch
      %31 = sbr.rel (0) target = $region17
    $region16: #{tpu_custom_call.1} parent=1 // pred_region
      _
    $region17: #{tpu_custom_call.1} parent=1 // pred_fallthru
      _
    // Predicated region
    $region18: #{tpu_custom_call.1} parent=1 // pred_check
      _
    $region19: #{tpu_custom_call.1} parent=1 // pred_check_branch
      %33 = sbr.rel (0) target = $region21
    $region20: #{tpu_custom_call.1} parent=1 // pred_region
      %34 = dma.done [#allocation6], 256
    $region21: #{tpu_custom_call.1} parent=1 // pred_fallthru
      _
    %s35 = sld [smem:[#allocation2]]
    %v36 = vld [vmem:[#allocation5] sm:$0xff]
    %v37 = vld [vmem:[#allocation5 + $0x8] sm:$0xff]
    %v40 = vlaneseq
    %v41 = vshrl.u32 %v40, 7
    %v42 = vsub.s32 0, %v41
    %v43 = vrot.slane %v36, %v42
    %v44 = vlaneseq
    %v45 = vshrl.u32 %v44, 7
    %v46 = vsub.s32 1, %v45
    %v47 = vrot.slane %v36, %v46
    %v48 = vlaneseq
    %v49 = vshrl.u32 %v48, 7
    %v50 = vsub.s32 2, %v49
    %v51 = vrot.slane %v36, %v50
    %v52 = vlaneseq
    %v53 = vshrl.u32 %v52, 7
    %v54 = vsub.s32 3, %v53
    %v55 = vrot.slane %v36, %v54
    %v56 = vlaneseq
    %v57 = vshrl.u32 %v56, 7
    %v58 = vsub.s32 4, %v57
    %v59 = vrot.slane %v36, %v58
    %v60 = vlaneseq
    %v61 = vshrl.u32 %v60, 7
    %v62 = vsub.s32 5, %v61
    %v63 = vrot.slane %v36, %v62
    %v64 = vlaneseq
    %v65 = vshrl.u32 %v64, 7
    %v66 = vsub.s32 6, %v65
    %v67 = vrot.slane %v36, %v66
    %v68 = vlaneseq
    %v69 = vshrl.u32 %v68, 7
    %v70 = vsub.s32 7, %v69
    %v71 = vrot.slane %v36, %v70
    %v72 = vlaneseq
    %v73 = vshrl.u32 %v72, 7
    %v74 = vsub.s32 0, %v73
    %v75 = vrot.slane %v37, %v74
    %v76 = vlaneseq
    %v77 = vshrl.u32 %v76, 7
    %v78 = vsub.s32 1, %v77
    %v79 = vrot.slane %v37, %v78
    %v80 = vlaneseq
    %v81 = vshrl.u32 %v80, 7
    %v82 = vsub.s32 2, %v81
    %v83 = vrot.slane %v37, %v82
    %v84 = vlaneseq
    %v85 = vshrl.u32 %v84, 7
    %v86 = vsub.s32 3, %v85
    %v87 = vrot.slane %v37, %v86
    %v88 = vlaneseq
    %v89 = vshrl.u32 %v88, 7
    %v90 = vsub.s32 4, %v89
    %v91 = vrot.slane %v37, %v90
    %v92 = vlaneseq
    %v93 = vshrl.u32 %v92, 7
    %v94 = vsub.s32 5, %v93
    %v95 = vrot.slane %v37, %v94
    %v96 = vlaneseq
    %v97 = vshrl.u32 %v96, 7
    %v98 = vsub.s32 6, %v97
    %v99 = vrot.slane %v37, %v98
    %v100 = vlaneseq
    %v101 = vshrl.u32 %v100, 7
    %v102 = vsub.s32 7, %v101
    %v103 = vrot.slane %v37, %v102
    %120 = vrot.lane.b32.xlu0 %v43, 127
    %v121 = vpop.permute.xlu0 %120
    %122 = vrot.lane.b32.xlu0 %v47, 127
    %v123 = vpop.permute.xlu0 %122
    %124 = vrot.lane.b32.xlu0 %v51, 127
    %v125 = vpop.permute.xlu0 %124
    %126 = vrot.lane.b32.xlu0 %v55, 127
    %v127 = vpop.permute.xlu0 %126
    %128 = vrot.lane.b32.xlu0 %v59, 127
    %v129 = vpop.permute.xlu0 %128
    %130 = vrot.lane.b32.xlu0 %v63, 127
    %v131 = vpop.permute.xlu0 %130
    %132 = vrot.lane.b32.xlu0 %v67, 127
    %v133 = vpop.permute.xlu0 %132
    %134 = vrot.lane.b32.xlu0 %v71, 127
    %v135 = vpop.permute.xlu0 %134
    %136 = vrot.lane.b32.xlu0 %v75, 127
    %v137 = vpop.permute.xlu0 %136
    %138 = vrot.lane.b32.xlu0 %v79, 127
    %v139 = vpop.permute.xlu0 %138
    %140 = vrot.lane.b32.xlu0 %v83, 127
    %v141 = vpop.permute.xlu0 %140
    %142 = vrot.lane.b32.xlu0 %v87, 127
    %v143 = vpop.permute.xlu0 %142
    %144 = vrot.lane.b32.xlu0 %v91, 127
    %v145 = vpop.permute.xlu0 %144
    %146 = vrot.lane.b32.xlu0 %v95, 127
    %v147 = vpop.permute.xlu0 %146
    %148 = vrot.lane.b32.xlu0 %v99, 127
    %v149 = vpop.permute.xlu0 %148
    %150 = vrot.lane.b32.xlu0 %v103, 127
    %v151 = vpop.permute.xlu0 %150
    %v152 = vlaneseq
    %v153 = vand.u32 %v152, 127
    %vm154 = vcmp.lt.s32.totalorder %v153, 127
    %v155 = vsel %vm154, %v149, %v151
    %v156 = vsel %vm154, %v147, %v149
    %v157 = vsel %vm154, %v145, %v147
    %v158 = vsel %vm154, %v143, %v145
    %v159 = vsel %vm154, %v141, %v143
    %v160 = vsel %vm154, %v139, %v141
    %v161 = vsel %vm154, %v137, %v139
    %v162 = vsel %vm154, %v135, %v137
    %v163 = vsel %vm154, %v133, %v135
    %v164 = vsel %vm154, %v131, %v133
    %v165 = vsel %vm154, %v129, %v131
    %v166 = vsel %vm154, %v127, %v129
    %v167 = vsel %vm154, %v125, %v127
    %v168 = vsel %vm154, %v123, %v125
    %v169 = vsel %vm154, %v121, %v123
    %v170 = vsel %vm154, %v151, %v121
    %171 = vrot.lane.b32.xlu0 %v43, 1
    %v172 = vpop.permute.xlu0 %171
    %173 = vrot.lane.b32.xlu0 %v47, 1
    %v174 = vpop.permute.xlu0 %173
    %175 = vrot.lane.b32.xlu0 %v51, 1
    %v176 = vpop.permute.xlu0 %175
    %177 = vrot.lane.b32.xlu0 %v55, 1
    %v178 = vpop.permute.xlu0 %177
    %179 = vrot.lane.b32.xlu0 %v59, 1
    %v180 = vpop.permute.xlu0 %179
    %181 = vrot.lane.b32.xlu0 %v63, 1
    %v182 = vpop.permute.xlu0 %181
    %183 = vrot.lane.b32.xlu0 %v67, 1
    %v184 = vpop.permute.xlu0 %183
    %185 = vrot.lane.b32.xlu0 %v71, 1
    %v186 = vpop.permute.xlu0 %185
    %187 = vrot.lane.b32.xlu0 %v75, 1
    %v188 = vpop.permute.xlu0 %187
    %189 = vrot.lane.b32.xlu0 %v79, 1
    %v190 = vpop.permute.xlu0 %189
    %191 = vrot.lane.b32.xlu0 %v83, 1
    %v192 = vpop.permute.xlu0 %191
    %193 = vrot.lane.b32.xlu0 %v87, 1
    %v194 = vpop.permute.xlu0 %193
    %195 = vrot.lane.b32.xlu0 %v91, 1
    %v196 = vpop.permute.xlu0 %195
    %197 = vrot.lane.b32.xlu0 %v95, 1
    %v198 = vpop.permute.xlu0 %197
    %199 = vrot.lane.b32.xlu0 %v99, 1
    %v200 = vpop.permute.xlu0 %199
    %201 = vrot.lane.b32.xlu0 %v103, 1
    %v202 = vpop.permute.xlu0 %201
    %vm203 = vcmp.lt.s32.totalorder %v153, 1
    %v204 = vsel %vm203, %v200, %v202
    %v205 = vsel %vm203, %v198, %v200
    %v206 = vsel %vm203, %v196, %v198
    %v207 = vsel %vm203, %v194, %v196
    %v208 = vsel %vm203, %v192, %v194
    %v209 = vsel %vm203, %v190, %v192
    %v210 = vsel %vm203, %v188, %v190
    %v211 = vsel %vm203, %v186, %v188
    %v212 = vsel %vm203, %v184, %v186
    %v213 = vsel %vm203, %v182, %v184
    %v214 = vsel %vm203, %v180, %v182
    %v215 = vsel %vm203, %v178, %v180
    %v216 = vsel %vm203, %v176, %v178
    %v217 = vsel %vm203, %v174, %v176
    %v218 = vsel %vm203, %v172, %v174
    %v219 = vsel %vm203, %v202, %v172
    %v220 = vadd.s32 %v153, 128
    %v221 = vadd.s32 %v153, 256
    %v222 = vadd.s32 %v153, 384
    %v223 = vadd.s32 %v153, 512
    %v224 = vadd.s32 %v153, 640
    %v225 = vadd.s32 %v153, 768
    %v226 = vadd.s32 %v153, 896
    %v227 = vadd.s32 %v153, 1024
    %v228 = vadd.s32 %v153, 1152
    %v229 = vadd.s32 %v153, 1280
    %v230 = vadd.s32 %v153, 1408
    %v231 = vadd.s32 %v153, 1536
    %v232 = vadd.s32 %v153, 1664
    %v233 = vadd.s32 %v153, 1792
    %v234 = vadd.s32 %v153, 1920
    %vm235 = vcmp.eq.s32.totalorder %v153, 2047
    %vm236 = vcmp.eq.s32.totalorder %v220, 2047
    %vm237 = vcmp.eq.s32.totalorder %v221, 2047
    %vm238 = vcmp.eq.s32.totalorder %v222, 2047
    %vm239 = vcmp.eq.s32.totalorder %v223, 2047
    %vm240 = vcmp.eq.s32.totalorder %v224, 2047
    %vm241 = vcmp.eq.s32.totalorder %v225, 2047
    %vm242 = vcmp.eq.s32.totalorder %v226, 2047
    %vm243 = vcmp.eq.s32.totalorder %v227, 2047
    %vm244 = vcmp.eq.s32.totalorder %v228, 2047
    %vm245 = vcmp.eq.s32.totalorder %v229, 2047
    %vm246 = vcmp.eq.s32.totalorder %v230, 2047
    %vm247 = vcmp.eq.s32.totalorder %v231, 2047
    %vm248 = vcmp.eq.s32.totalorder %v232, 2047
    %vm249 = vcmp.eq.s32.totalorder %v233, 2047
    %vm250 = vcmp.eq.s32.totalorder %v234, 2047
    %v251 = vld [vmem:[#allocation3] sm:$0x1]
    %253 = vset.pattern.permute.xlu0 0
    %254 = vperm.xlu0 %253, %v251
    %v255 = vpop.permute.xlu0 %254
    %v257 = vlaneseq
    %v258 = vshrl.u32 %v257, 7
    %v259 = vsub.s32 0, %v258
    %v260 = vrot.slane %v255, %v259
    %v261 = vsel %vm235, %v260, %v169
    %v262 = vsel %vm236, %v260, %v168
    %v263 = vsel %vm237, %v260, %v167
    %v264 = vsel %vm238, %v260, %v166
    %v265 = vsel %vm239, %v260, %v165
    %v266 = vsel %vm240, %v260, %v164
    %v267 = vsel %vm241, %v260, %v163
    %v268 = vsel %vm242, %v260, %v162
    %v269 = vsel %vm243, %v260, %v161
    %v270 = vsel %vm244, %v260, %v160
    %v271 = vsel %vm245, %v260, %v159
    %v272 = vsel %vm246, %v260, %v158
    %v273 = vsel %vm247, %v260, %v157
    %v274 = vsel %vm248, %v260, %v156
    %v275 = vsel %vm249, %v260, %v155
    %v276 = vsel %vm250, %v260, %v170
    %vm277 = vcmp.eq.s32.totalorder %v153, 0
    %vm278 = vcmp.eq.s32.totalorder %v220, 0
    %vm279 = vcmp.eq.s32.totalorder %v221, 0
    %vm280 = vcmp.eq.s32.totalorder %v222, 0
    %vm281 = vcmp.eq.s32.totalorder %v223, 0
    %vm282 = vcmp.eq.s32.totalorder %v224, 0
    %vm283 = vcmp.eq.s32.totalorder %v225, 0
    %vm284 = vcmp.eq.s32.totalorder %v226, 0
    %vm285 = vcmp.eq.s32.totalorder %v227, 0
    %vm286 = vcmp.eq.s32.totalorder %v228, 0
    %vm287 = vcmp.eq.s32.totalorder %v229, 0
    %vm288 = vcmp.eq.s32.totalorder %v230, 0
    %vm289 = vcmp.eq.s32.totalorder %v231, 0
    %vm290 = vcmp.eq.s32.totalorder %v232, 0
    %vm291 = vcmp.eq.s32.totalorder %v233, 0
    %vm292 = vcmp.eq.s32.totalorder %v234, 0
    %v293 = vld [vmem:[#allocation4] sm:$0x1]
    %295 = vset.pattern.permute.xlu0 0
    %296 = vperm.xlu0 %295, %v293
    %v297 = vpop.permute.xlu0 %296
    %v299 = vlaneseq
    %v300 = vshrl.u32 %v299, 7
    %v301 = vsub.s32 0, %v300
    %v302 = vrot.slane %v297, %v301
    %v303 = vsel %vm277, %v302, %v219
    %v304 = vsel %vm278, %v302, %v218
    %v305 = vsel %vm279, %v302, %v217
    %v306 = vsel %vm280, %v302, %v216
    %v307 = vsel %vm281, %v302, %v215
    %v308 = vsel %vm282, %v302, %v214
    %v309 = vsel %vm283, %v302, %v213
    %v310 = vsel %vm284, %v302, %v212
    %v311 = vsel %vm285, %v302, %v211
    %v312 = vsel %vm286, %v302, %v210
    %v313 = vsel %vm287, %v302, %v209
    %v314 = vsel %vm288, %v302, %v208
    %v315 = vsel %vm289, %v302, %v207
    %v316 = vsel %vm290, %v302, %v206
    %v317 = vsel %vm291, %v302, %v205
    %v318 = vsel %vm292, %v302, %v204
    %v319 = vsub.f32 %v261, %v303
    %v320 = vsub.f32 %v262, %v304
    %v321 = vsub.f32 %v263, %v305
    %v322 = vsub.f32 %v264, %v306
    %v323 = vsub.f32 %v265, %v307
    %v324 = vsub.f32 %v266, %v308
    %v325 = vsub.f32 %v267, %v309
    %v326 = vsub.f32 %v268, %v310
    %v327 = vsub.f32 %v269, %v311
    %v328 = vsub.f32 %v270, %v312
    %v329 = vsub.f32 %v271, %v313
    %v330 = vsub.f32 %v272, %v314
    %v331 = vsub.f32 %v273, %v315
    %v332 = vsub.f32 %v274, %v316
    %v333 = vsub.f32 %v275, %v317
    %v334 = vsub.f32 %v276, %v318
    %v335 = vstv %s35
    %v336 = vmul.f32 %v319, %v335
    %v337 = vmul.f32 %v320, %v335
    %v338 = vmul.f32 %v321, %v335
    %v339 = vmul.f32 %v322, %v335
    %v340 = vmul.f32 %v323, %v335
    %v341 = vmul.f32 %v324, %v335
    %v342 = vmul.f32 %v325, %v335
    %v343 = vmul.f32 %v326, %v335
    %v344 = vmul.f32 %v327, %v335
    %v345 = vmul.f32 %v328, %v335
    %v346 = vmul.f32 %v329, %v335
    %v347 = vmul.f32 %v330, %v335
    %v348 = vmul.f32 %v331, %v335
    %v349 = vmul.f32 %v332, %v335
    %v350 = vmul.f32 %v333, %v335
    %v351 = vmul.f32 %v334, %v335
    %v368 = vcombine.low %v336, %v337
    %v369 = vcombine.low %v338, %v339
    %v370 = vcombine.low %v340, %v341
    %v371 = vcombine.low %v342, %v343
    %v373 = vunpack.c.l.s4 1966171168
    %v374 = vunpack.c.0.s8 %v373
    %v375 = vlaneseq
    %v376 = vshrl.u32 %v375, 7
    %v377 = vsub.s32 %v374, %v376
    %v378 = vrot.slane %v368, %v377
    %v380 = vunpack.c.l.s4 1966171168
    %v381 = vunpack.c.0.s8 %v380
    %v382 = vlaneseq
    %v383 = vshrl.u32 %v382, 7
    %v384 = vsub.s32 %v381, %v383
    %v385 = vrot.slane %v369, %v384
    %v387 = vunpack.c.l.s4 1966171168
    %v388 = vunpack.c.0.s8 %v387
    %v389 = vlaneseq
    %v390 = vshrl.u32 %v389, 7
    %v391 = vsub.s32 %v388, %v390
    %v392 = vrot.slane %v370, %v391
    %v394 = vunpack.c.l.s4 1966171168
    %v395 = vunpack.c.0.s8 %v394
    %v396 = vlaneseq
    %v397 = vshrl.u32 %v396, 7
    %v398 = vsub.s32 %v395, %v397
    %v399 = vrot.slane %v371, %v398
    %v400 = vcombine.low %v378, %v385
    %v401 = vcombine.low %v392, %v399
    %v403 = vunpack.c.l.s4 1966171168
    %v404 = vunpack.c.0.s8 %v403
    %v405 = vlaneseq
    %v406 = vshrl.u32 %v405, 7
    %v407 = vsub.s32 %v404, %v406
    %v408 = vrot.slane %v400, %v407
    %v410 = vunpack.c.l.s4 1966171168
    %v411 = vunpack.c.0.s8 %v410
    %v412 = vlaneseq
    %v413 = vshrl.u32 %v412, 7
    %v414 = vsub.s32 %v411, %v413
    %v415 = vrot.slane %v401, %v414
    %v416 = vcombine.low %v408, %v415
    %v417 = vcombine.low %v344, %v345
    %v418 = vcombine.low %v346, %v347
    %v419 = vcombine.low %v348, %v349
    %v420 = vcombine.low %v350, %v351
    %v422 = vunpack.c.l.s4 1966171168
    %v423 = vunpack.c.0.s8 %v422
    %v424 = vlaneseq
    %v425 = vshrl.u32 %v424, 7
    %v426 = vsub.s32 %v423, %v425
    %v427 = vrot.slane %v417, %v426
    %v429 = vunpack.c.l.s4 1966171168
    %v430 = vunpack.c.0.s8 %v429
    %v431 = vlaneseq
    %v432 = vshrl.u32 %v431, 7
    %v433 = vsub.s32 %v430, %v432
    %v434 = vrot.slane %v418, %v433
    %v436 = vunpack.c.l.s4 1966171168
    %v437 = vunpack.c.0.s8 %v436
    %v438 = vlaneseq
    %v439 = vshrl.u32 %v438, 7
    %v440 = vsub.s32 %v437, %v439
    %v441 = vrot.slane %v419, %v440
    %v443 = vunpack.c.l.s4 1966171168
    %v444 = vunpack.c.0.s8 %v443
    %v445 = vlaneseq
    %v446 = vshrl.u32 %v445, 7
    %v447 = vsub.s32 %v444, %v446
    %v448 = vrot.slane %v420, %v447
    %v449 = vcombine.low %v427, %v434
    %v450 = vcombine.low %v441, %v448
    %v452 = vunpack.c.l.s4 1966171168
    %v453 = vunpack.c.0.s8 %v452
    %v454 = vlaneseq
    %v455 = vshrl.u32 %v454, 7
    %v456 = vsub.s32 %v453, %v455
    %v457 = vrot.slane %v449, %v456
    %v459 = vunpack.c.l.s4 1966171168
    %v460 = vunpack.c.0.s8 %v459
    %v461 = vlaneseq
    %v462 = vshrl.u32 %v461, 7
    %v463 = vsub.s32 %v460, %v462
    %v464 = vrot.slane %v450, %v463
    %v465 = vcombine.low %v457, %v464
    %468 = vst [vmem:[#allocation8] sm:$0xff] %v416
    %469 = vst [vmem:[#allocation8 + $0x8] sm:$0xff] %v465
    // Predicated region
    $region22: #{tpu_custom_call.1} parent=1 // pred_check
      _
    $region23: #{tpu_custom_call.1} parent=1 // pred_check_branch
      %471 = sbr.rel (0) target = $region25
    $region24: #{tpu_custom_call.1} parent=1 // pred_region
      %s473 = ssub.s32 256, 256
      %474 = vsyncadd [#allocation7], %s473
      %s476 = sshll.u32 [#allocation8], 4
      %s477 = int_to_ptr.vmem [resolvable:$true] %s476
      %479 = dma.vmem_to_hbm [thread:$0]  %s477, 256, %s4, [#allocation7]
    $region25: #{tpu_custom_call.1} parent=1 // pred_fallthru
      _
    // Predicated region
    $region26: #{tpu_custom_call.1} parent=1 // pred_check
      _
    $region27: #{tpu_custom_call.1} parent=1 // pred_check_branch
      %481 = sbr.rel (0) target = $region29
    $region28: #{tpu_custom_call.1} parent=1 // pred_region
      %482 = dma.done [#allocation7], 256
    $region29: #{tpu_custom_call.1} parent=1 // pred_fallthru
      _
    %483 = vsyncpa [#allocation6], 1
    %484 = vsyncpa [#allocation7], 1

</llo_original>
